<compile_context>
chip_gen: v5e
topology: v5e:2x2
jax: 0.10.0
libtpu: 0.0.40
codegen_flags: <defaults>
</compile_context>

<pallas_src>
import functools

import jax
import jax.numpy as jnp
from jax import lax
from jax.experimental import pallas as pl
from jax.experimental.pallas import tpu as pltpu


def _round_up(x, m):
    return (x + m - 1) // m * m


def _vmem_capacity_bytes():
    """Per-TensorCore VMEM capacity, generation-aware with safe fallbacks."""
    try:
        cap = int(pltpu.get_tpu_info().vmem_capacity_bytes)
        if cap > 0:
            return cap
    except Exception:
        pass
    try:
        kind = jax.devices()[0].device_kind.lower()
        if "v7" in kind:
            return 64 << 20          # v7x: 64 MiB per TensorCore
    except Exception:
        pass
    return 128 << 20                 # v5e / v6e


def _num_tensorcores():
    """v7x has 2 TensorCores per chip; older generations have 1."""
    try:
        kind = jax.devices()[0].device_kind.lower()
        if "v7" in kind:
            return 2
    except Exception:
        pass
    return 1


# ---------------------------------------------------------------------------
# Kernel 1: dense projection (parallel over row blocks)
#   out = relu(emb @ Wm + bm) @ W_ih + b    (bf16 matmuls, f32 accum, bf16 out)
# ---------------------------------------------------------------------------
def _proj_kernel(emb_ref, wm_ref, bm_ref, wih_ref, b_ref, out_ref):
    x = emb_ref[...]                                                  # (R, E) bf16
    h = jnp.dot(x, wm_ref[...], preferred_element_type=jnp.float32)  # (R, V) f32
    h = jnp.maximum(h + bm_ref[...], 0.0)                            # ReLU
    g = jnp.dot(h.astype(jnp.bfloat16), wih_ref[...],
                preferred_element_type=jnp.float32)                  # (R, 4Hp)
    out_ref[...] = (g + b_ref[...]).astype(out_ref.dtype)            # bf16 store


# ---------------------------------------------------------------------------
# Kernel 2: sequential LSTM recurrence + last-valid-step snapshot
# ---------------------------------------------------------------------------
def _lstm_kernel(len_ref, pg_ref, whh_hbm, out_ref,
                 h_sc, c_sc, whh_sc, dma_sem, *, unroll):
    """Grid = (batch_blocks, time_blocks); one step == Tt timesteps of one
    batch shard.

    len_ref : (Bb, 1) int32    sequence lengths (0 for padded batch rows)
    pg_ref  : (Tt, Bb, 4Hp)    precomputed x@W_ih + biases (bf16), order i,f,g,o
    whh_hbm : (Hp, 4Hp) bf16   LSTM hidden weights, raw HBM ref (pl.ANY)
    out_ref : (Bb, Hp) f32     h at last valid timestep (resident accumulator)
    h_sc/c_sc : (Bb, Hp) f32   LSTM carry (persists across time blocks)
    whh_sc  : (Hp, 4Hp) bf16   single-buffered copy of W_hh
    """
    t_blk = pg_ref.shape[0]
    Hp = h_sc.shape[1]
    ti = pl.program_id(1)                       # time axis (inner, "arbitrary")

    @pl.when(ti == 0)
    def _():
        cp = pltpu.make_async_copy(whh_hbm, whh_sc, dma_sem)
        cp.start()
        h_sc[...] = jnp.zeros_like(h_sc)
        c_sc[...] = jnp.zeros_like(c_sc)
        out_ref[...] = jnp.zeros_like(out_ref)
        cp.wait()

    last_t = len_ref[...] - 1                                        # (Bb, 1)

    def cell(s, carry):
        h, c, o = carry
        t = ti * t_blk + s
        # Only the recurrent matmul is left in the sequential loop; f32 accum.
        gates = pg_ref[s].astype(jnp.float32) + jnp.dot(
            h.astype(jnp.bfloat16), whh_sc[...],
            preferred_element_type=jnp.float32)
        i_g = jax.nn.sigmoid(gates[:, 0 * Hp:1 * Hp])
        f_g = jax.nn.sigmoid(gates[:, 1 * Hp:2 * Hp])
        g_g = jnp.tanh(gates[:, 2 * Hp:3 * Hp])
        o_g = jax.nn.sigmoid(gates[:, 3 * Hp:4 * Hp])
        c = f_g * c + i_g * g_g
        h = o_g * jnp.tanh(c)
        # Register-carried snapshot, off the h/c dependency path.
        o = jnp.where(last_t == t, h, o)
        return h, c, o

    h, c, o = lax.fori_loop(0, t_blk, cell,
                            (h_sc[...], c_sc[...], out_ref[...]),
                            unroll=unroll)
    h_sc[...] = h
    c_sc[...] = c
    out_ref[...] = o


# ---------------------------------------------------------------------------
# Wrapper
# ---------------------------------------------------------------------------
def rnn_encoder_forward(input_labels, params, *, t_block=16,
                        proj_row_target=1024, rec_unroll=4, batch_blocks=None):
    """input_labels: (B, T) int32, 0 == pad. Returns (B, H) float32."""
    emb_table, wm_t, bm, wih_t, whh_t, b_sum = params
    B, T = input_labels.shape
    E = emb_table.shape[1]
    V = wm_t.shape[1]
    H = whh_t.shape[0]

    # vreg-aligned padded sizes: batch -> sublanes(8), hidden -> lanes(128).
    Bp = _round_up(B, 8)
    Hp = _round_up(H, 128)

    # ---- generation-aware scoped-VMEM budget (leave compiler headroom).
    vmem_cap = _vmem_capacity_bytes()
    vmem_budget = int(vmem_cap * 0.80)

    # ---- batch sharding of the recurrence across TensorCores (v7x only).
    if batch_blocks is None:
        batch_blocks = 2 if (_num_tensorcores() >= 2 and Bp >= 16) else 1
    if Bp % (8 * batch_blocks) != 0:
        batch_blocks = 1
    Bb = Bp // batch_blocks

    # ---- recurrence time block: shrink until the working set provably fits.
    Tt = max(1, min(t_block, T))

    def rec_need(tt):
        return (2 * tt * Bb * 4 * Hp * 2       # bf16 pre_gates blocks (2 bufs)
                + Hp * 4 * Hp * 2              # W_hh, single-buffered bf16
                + 2 * Bb * Hp * 4              # h/c carries f32
                + 2 * Bb * Hp * 4              # out accumulator block
                + 2 * Bb * 4)                  # lengths
    while Tt > 1 and rec_need(Tt) > vmem_budget:
        Tt = max(1, Tt // 2)
    assert rec_need(Tt) <= vmem_budget, (
        f"recurrence working set {rec_need(Tt)}B exceeds VMEM budget "
        f"{vmem_budget}B even at Tt=1; reduce batch/hidden per block")
    lstm_vmem = min(max(rec_need(Tt) + (4 << 20), 16 << 20), vmem_budget)

    Tp = _round_up(T, Tt)
    n_time = Tp // Tt
    total_rows = Tp * Bp

    # ---- projection row block: decoupled from Tt.  Largest multiple-of-8
    # divisor of total_rows that is <= proj_row_target and fits VMEM.
    def proj_need(rows):
        return (2 * rows * E * 2               # emb blocks bf16 (2 bufs)
                + 2 * rows * 4 * Hp * 2        # pre_gates out blocks bf16 (2 bufs)
                + 2 * (E * V + V * 4 * Hp) * 2 # weights bf16 (double-buffered)
                + 2 * (V + 4 * Hp) * 4)        # biases f32
    # TODO(synk): mark the constant-weight in_specs with
    # pipeline_mode=pl.Buffered(1) to halve their VMEM charge once stable.
    Rb = 8
    cand = min(total_rows, _round_up(proj_row_target, 8))
    for d in range(cand, 7, -8):
        if total_rows % d == 0 and proj_need(d) <= vmem_budget:
            Rb = d
            break
    assert proj_need(Rb) <= vmem_budget, (
        f"projection working set {proj_need(Rb)}B exceeds VMEM budget "
        f"{vmem_budget}B; weights too large for this tiling")
    n_proj = total_rows // Rb
    proj_vmem = min(max(proj_need(Rb) + (4 << 20), 16 << 20), vmem_budget)

    # ---- glue (plain XLA): lengths, time-major embedding gather, weight prep.
    # NOTE: a pad id (0) inside a valid sequence would shift last_t (same
    # assumption as the original module's lengths computation).
    lengths = (input_labels != 0).sum(axis=1).astype(jnp.int32)      # (B,)
    len_pad = jnp.zeros((Bp, 1), jnp.int32).at[:B, 0].set(lengths)

    # Gather directly in time-major order (avoids a (B,T,E)->(T,B,E) HBM
    # transpose pass before kernel 1).
    # TODO(synk): fold the gather into the proj kernel via scalar-prefetched
    # token ids (PrefetchScalarGridSpec + pl.Element row index_map) to also
    # skip materializing emb2d.
    emb_tm = jnp.take(emb_table, input_labels.T, axis=0)             # (T, B, E)
    emb_tm = jnp.pad(emb_tm, ((0, Tp - T), (0, Bp - B), (0, 0)))
    emb2d = emb_tm.reshape(Tp * Bp, E).astype(jnp.bfloat16)

    def pad_gates(w):                    # (..., 4H) -> (..., 4Hp), per gate
        w = w.reshape(*w.shape[:-1], 4, H)
        w = jnp.pad(w, [(0, 0)] * (w.ndim - 1) + [(0, Hp - H)])
        return w.reshape(*w.shape[:-2], 4 * Hp)

    wm_bf = wm_t.astype(jnp.bfloat16)                                # (E, V)
    bm_f = bm.astype(jnp.float32)                                    # (1, V)
    wih_bf = pad_gates(wih_t).astype(jnp.bfloat16)                   # (V, 4Hp)
    b_pad = pad_gates(b_sum).astype(jnp.float32)                     # (1, 4Hp)
    whh_bf = jnp.pad(pad_gates(whh_t),
                     ((0, Hp - H), (0, 0))).astype(jnp.bfloat16)     # (Hp, 4Hp)

    # ---- kernel 1: all-timestep projection (parallel; megacore-friendly).
    pre_gates = pl.pallas_call(
        _proj_kernel,
        out_shape=jax.ShapeDtypeStruct((total_rows, 4 * Hp), jnp.bfloat16),
        grid_spec=pltpu.PrefetchScalarGridSpec(
            num_scalar_prefetch=0,
            grid=(n_proj,),
            in_specs=[
                pl.BlockSpec((Rb, E), lambda i: (i, 0)),          # emb rows
                pl.BlockSpec((E, V), lambda i: (0, 0)),           # Wm^T
                pl.BlockSpec((1, V), lambda i: (0, 0)),           # bm
                pl.BlockSpec((V, 4 * Hp), lambda i: (0, 0)),      # W_ih^T
                pl.BlockSpec((1, 4 * Hp), lambda i: (0, 0)),      # b_ih+b_hh
            ],
            out_specs=pl.BlockSpec((Rb, 4 * Hp), lambda i: (i, 0)),
        ),
        compiler_params=pltpu.CompilerParams(
            dimension_semantics=("parallel",),
            vmem_limit_bytes=proj_vmem),
    )(emb2d, wm_bf, bm_f, wih_bf, b_pad)

    pg3d = pre_gates.reshape(Tp, Bp, 4 * Hp)          # (T, B, 4H) time-major

    # ---- kernel 2: sequential recurrence over time blocks (batch-sharded on
    # v7x via the leading "parallel" axis; single block elsewhere).
    # TODO(synk): on HBM-bound v5e, fuse the per-block x@W_ih projection into
    # this kernel to skip the pre_gates round trip through HBM.
    lstm_kernel = functools.partial(
        _lstm_kernel, unroll=max(1, min(rec_unroll, Tt)))

    out_pad = pl.pallas_call(
        lstm_kernel,
        out_shape=jax.ShapeDtypeStruct((Bp, Hp), jnp.float32),
        grid_spec=pltpu.PrefetchScalarGridSpec(
            num_scalar_prefetch=0,
            grid=(batch_blocks, n_time),
            in_specs=[
                pl.BlockSpec((Bb, 1), lambda bi, ti: (bi, 0)),            # lengths
                pl.BlockSpec((Tt, Bb, 4 * Hp), lambda bi, ti: (ti, bi, 0)),  # gates
                pl.BlockSpec(memory_space=pl.ANY),                        # W_hh
            ],
            out_specs=pl.BlockSpec((Bb, Hp), lambda bi, ti: (bi, 0)),
            scratch_shapes=[
                pltpu.VMEM((Bb, Hp), jnp.float32),         # h carry
                pltpu.VMEM((Bb, Hp), jnp.float32),         # c carry
                pltpu.VMEM((Hp, 4 * Hp), jnp.bfloat16),    # W_hh (single buffer)
                pltpu.SemaphoreType.DMA(()),               # copy semaphore
            ]),
        compiler_params=pltpu.CompilerParams(
            dimension_semantics=("parallel", "arbitrary"),
            vmem_limit_bytes=lstm_vmem),
    )(len_pad, pg3d, whh_bf)

    return out_pad[:B, :H]


# ---------------------------------------------------------------------------
# Pure-JAX f32 reference (same math, lax.scan over time)
# ---------------------------------------------------------------------------
def rnn_encoder_reference(input_labels, params):
    emb_table, wm_t, bm, wih_t, whh_t, b_sum = params
    B, T = input_labels.shape
    H = whh_t.shape[0]
    lengths = (input_labels != 0).sum(axis=1).astype(jnp.int32)
    emb = jnp.take(emb_table, input_labels, axis=0)
    x = jax.nn.relu(emb @ wm_t + bm)                 # (B, T, V)

    def step(carry, xt):
        h, c = carry
        gates = xt @ wih_t + h @ whh_t + b_sum
        i_g = jax.nn.sigmoid(gates[:, 0 * H:1 * H])
        f_g = jax.nn.sigmoid(gates[:, 1 * H:2 * H])
        g_g = jnp.tanh(gates[:, 2 * H:3 * H])
        o_g = jax.nn.sigmoid(gates[:, 3 * H:4 * H])
        c = f_g * c + i_g * g_g
        h = o_g * jnp.tanh(c)
        return (h, c), h

    h0 = jnp.zeros((B, H), jnp.float32)
    c0 = jnp.zeros((B, H), jnp.float32)
    (_, _), hs = lax.scan(step, (h0, c0), jnp.transpose(x, (1, 0, 2)))
    hs = jnp.transpose(hs, (1, 0, 2))                # (B, T, H)
    return hs[jnp.arange(B), lengths - 1]


def make_params(key, vocab_size, word_embedding_size, word_vec_size, hidden_size):
    ks = jax.random.split(key, 7)
    E, V, H = word_embedding_size, word_vec_size, hidden_size
    emb_table = jax.random.normal(ks[0], (vocab_size, E), jnp.float32) * 0.1
    wm_t = jax.random.normal(ks[1], (E, V), jnp.float32) * 0.1      # Linear W^T
    bm = jax.random.normal(ks[2], (1, V), jnp.float32) * 0.1
    wih_t = jax.random.normal(ks[3], (V, 4 * H), jnp.float32) * 0.1  # LSTM W_ih^T
    whh_t = jax.random.normal(ks[4], (H, 4 * H), jnp.float32) * 0.1  # LSTM W_hh^T
    b_ih = jax.random.normal(ks[5], (1, 4 * H), jnp.float32) * 0.1
    b_hh = jax.random.normal(ks[6], (1, 4 * H), jnp.float32) * 0.1
    return (emb_table, wm_t, bm, wih_t, whh_t, b_ih + b_hh)


if __name__ == "__main__":
    vocab_size = 32
    word_embedding_size = 16
    word_vec_size = 16
    hidden_size = 32
    batch, seq_len = 2, 8

    key = jax.random.PRNGKey(0)
    k_params, k_tok = jax.random.split(key)
    params = make_params(k_params, vocab_size, word_embedding_size,
                         word_vec_size, hidden_size)

    # Tokens: 0 is padding; seq 0 is full-length (matches the module's assert),
    # seq 1 has trailing padding.
    tokens = jax.random.randint(k_tok, (batch, seq_len), 1, vocab_size,
                                dtype=jnp.int32)
    pad_mask = jnp.array([[1] * seq_len,
                          [1, 1, 1, 1, 1, 0, 0, 0]], dtype=jnp.int32)
    input_labels = tokens * pad_mask

    out = rnn_encoder_forward(input_labels, params)
    out = jax.block_until_ready(out)

    ref = rnn_encoder_reference(input_labels, params)
    assert out.shape == (batch, hidden_size)
    # bf16 matmul operands + bf16 pre_gates (f32 accumulation) -> loosened
    # tolerance vs the f32 reference.
    assert jnp.allclose(out, ref, atol=2e-2, rtol=2e-2), "mismatch vs reference"

    print("KERNEL_OK")
</pallas_src>

<mosaic_0001>
module attributes {stable_mosaic.version = 11 : i64} {
  func.func @_proj_kernel(%arg0: i32, %arg1: memref<64x16xbf16, #tpu.memory_space<vmem>>, %arg2: memref<16x16xbf16, #tpu.memory_space<vmem>>, %arg3: memref<1x16xf32, #tpu.memory_space<vmem>>, %arg4: memref<16x512xbf16, #tpu.memory_space<vmem>>, %arg5: memref<1x512xf32, #tpu.memory_space<vmem>>, %arg6: memref<64x512xbf16, #tpu.memory_space<vmem>>) attributes {dimension_semantics = [#tpu.dimension_semantics<parallel>], iteration_bounds = array<i64: 1>, scalar_prefetch = 0 : i64, scratch_operands = 0 : i64, tpu.core_type = #tpu.core_type<tc>, window_params = [{transform_indices = @transform_0, window_bounds = array<i64: 64, 16>}, {pipeline_mode = #tpu.pipeline_mode<synchronous>, transform_indices = @transform_1, window_bounds = array<i64: 16, 16>}, {pipeline_mode = #tpu.pipeline_mode<synchronous>, transform_indices = @transform_2, window_bounds = array<i64: 1, 16>}, {pipeline_mode = #tpu.pipeline_mode<synchronous>, transform_indices = @transform_3, window_bounds = array<i64: 16, 512>}, {pipeline_mode = #tpu.pipeline_mode<synchronous>, transform_indices = @transform_4, window_bounds = array<i64: 1, 512>}, {transform_indices = @transform_5, window_bounds = array<i64: 64, 512>}]} {
    %c0 = arith.constant 0 : index
    %c0_0 = arith.constant 0 : index
    %0 = vector.load %arg1[%c0, %c0_0] : memref<64x16xbf16, #tpu.memory_space<vmem>>, vector<64x16xbf16>
    %c0_1 = arith.constant 0 : index
    %c0_2 = arith.constant 0 : index
    %1 = vector.load %arg2[%c0_1, %c0_2] : memref<16x16xbf16, #tpu.memory_space<vmem>>, vector<16x16xbf16>
    %cst = arith.constant dense<0.000000e+00> : vector<64x16xf32>
    %2 = tpu.matmul %0, %1, %cst {dimension_numbers = #tpu.dot_dimension_numbers<[1], [0], [0], [1], [0, 0, 1, 1], [], []>} : vector<64x16xbf16>, vector<16x16xbf16>, vector<64x16xf32> -> vector<64x16xf32>
    %c0_3 = arith.constant 0 : index
    %c0_4 = arith.constant 0 : index
    %3 = vector.load %arg3[%c0_3, %c0_4] : memref<1x16xf32, #tpu.memory_space<vmem>>, vector<1x16xf32>
    %4 = vector.broadcast %3 : vector<1x16xf32> to vector<64x16xf32>
    %5 = arith.addf %2, %4 : vector<64x16xf32>
    %cst_5 = arith.constant 0.000000e+00 : f32
    %6 = vector.broadcast %cst_5 : f32 to vector<64x16xf32>
    %7 = arith.maximumf %5, %6 : vector<64x16xf32>
    %8 = arith.truncf %7 : vector<64x16xf32> to vector<64x16xbf16>
    %c0_6 = arith.constant 0 : index
    %c0_7 = arith.constant 0 : index
    %9 = vector.load %arg4[%c0_6, %c0_7] : memref<16x512xbf16, #tpu.memory_space<vmem>>, vector<16x512xbf16>
    %cst_8 = arith.constant dense<0.000000e+00> : vector<64x512xf32>
    %10 = tpu.matmul %8, %9, %cst_8 {dimension_numbers = #tpu.dot_dimension_numbers<[1], [0], [0], [1], [0, 0, 1, 1], [], []>} : vector<64x16xbf16>, vector<16x512xbf16>, vector<64x512xf32> -> vector<64x512xf32>
    %c0_9 = arith.constant 0 : index
    %c0_10 = arith.constant 0 : index
    %11 = vector.load %arg5[%c0_9, %c0_10] : memref<1x512xf32, #tpu.memory_space<vmem>>, vector<1x512xf32>
    %12 = vector.broadcast %11 : vector<1x512xf32> to vector<64x512xf32>
    %13 = arith.addf %10, %12 : vector<64x512xf32>
    %14 = arith.truncf %13 : vector<64x512xf32> to vector<64x512xbf16>
    %c0_11 = arith.constant 0 : index
    %c0_12 = arith.constant 0 : index
    %15 = vector.load %arg6[%c0_11, %c0_12] : memref<64x512xbf16, #tpu.memory_space<vmem>>, vector<64x512xbf16>
    tpu.vector_store %arg6[%c0_11, %c0_12], %14 {strides = array<i32>} : memref<64x512xbf16, #tpu.memory_space<vmem>>, vector<64x512xbf16>,
    return
  }
  func.func @transform_0(%arg0: i32) -> (i32, i32) {
    %c0_i32 = arith.constant 0 : i32
    %c0_i32_0 = arith.constant 0 : i32
    return %arg0, %c0_i32 : i32, i32
  }
  func.func @transform_1(%arg0: i32) -> (i32, i32) {
    %c0_i32 = arith.constant 0 : i32
    %c0_i32_0 = arith.constant 0 : i32
    %c0_i32_1 = arith.constant 0 : i32
    return %c0_i32, %c0_i32_0 : i32, i32
  }
  func.func @transform_2(%arg0: i32) -> (i32, i32) {
    %c0_i32 = arith.constant 0 : i32
    %c0_i32_0 = arith.constant 0 : i32
    %c0_i32_1 = arith.constant 0 : i32
    return %c0_i32, %c0_i32_0 : i32, i32
  }
  func.func @transform_3(%arg0: i32) -> (i32, i32) {
    %c0_i32 = arith.constant 0 : i32
    %c0_i32_0 = arith.constant 0 : i32
    %c0_i32_1 = arith.constant 0 : i32
    return %c0_i32, %c0_i32_0 : i32, i32
  }
  func.func @transform_4(%arg0: i32) -> (i32, i32) {
    %c0_i32 = arith.constant 0 : i32
    %c0_i32_0 = arith.constant 0 : i32
    %c0_i32_1 = arith.constant 0 : i32
    return %c0_i32, %c0_i32_0 : i32, i32
  }
  func.func @transform_5(%arg0: i32) -> (i32, i32) {
    %c0_i32 = arith.constant 0 : i32
    %c0_i32_0 = arith.constant 0 : i32
    return %arg0, %c0_i32 : i32, i32
  }
}

</mosaic_0001>

<llo_original>
// kernel: tpu_custom_call.1
$region0: #{tpu_custom_call.1}
  #allocation0 [shape = 'u32[]', space=smem, size = 0x4, offset = 0x4, fixed_abs, tag = 'smem constant byte address 0x4 - core index']
  #allocation1 [shape = 'u32[72,128]{1,0:T(1,128)}', space=vmem, size = 0x9000, scoped, tag = 'internal scratch']
  %s0 = inlined_call_operand.vmem [shape: bf16[64,16], index: 0, kind: input, shape index: {}]
  %s1 = inlined_call_operand.vmem [shape: bf16[16,16], index: 1, kind: input, shape index: {}]
  %s2 = inlined_call_operand.vmem [shape: f32[1,16], index: 2, kind: input, shape index: {}]
  %s3 = inlined_call_operand.vmem [shape: bf16[16,512], index: 3, kind: input, shape index: {}]
  %s4 = inlined_call_operand.hbm [shape: f32[1,512], index: 4, kind: input, shape index: {}]
  %s5 = inlined_call_operand.hbm [shape: bf16[64,512], index: 5, kind: output, shape index: {}]
  %s6 = sld [smem:[#allocation0]]
  $region34: #{tpu_custom_call.1} parent=0
    _
  %s8 = ssub.s32 1, %s6
  %s9 = scalar_select 0, %s8, %s6
  $region1: #{tpu_custom_call.1} parent=0
    #allocation2 [shape = 'u8[2048]{0}', space=vmem, size = 0x800, scoped, tag = 'input window, operand 4, single buffered']
    #allocation3 [shape = 's32[1]{0}', space=sflag, size = 0x4, scoped, tag = 'scoped memory for tpu_custom_call.1']
    #allocation4 [shape = 's32[1]{0}', space=sflag, size = 0x4, scoped, tag = 'scoped memory for tpu_custom_call.1']
    #allocation5 [shape = 'u8[65536]{0}', space=vmem, size = 0x10000, scoped, tag = 'output window, operand 0, single buffered']
    %10 = vsyncpa [#allocation3], 0
    %11 = vsyncpa [#allocation4], 0
    // Predicated region
    $region2: #{tpu_custom_call.1} parent=1 // pred_check
      _
    $region3: #{tpu_custom_call.1} parent=1 // pred_check_branch
      %13 = sbr.rel (0) target = $region5
    $region4: #{tpu_custom_call.1} parent=1 // pred_region
      _
    $region5: #{tpu_custom_call.1} parent=1 // pred_fallthru
      _
    // Predicated region
    $region6: #{tpu_custom_call.1} parent=1 // pred_check
      _
    $region7: #{tpu_custom_call.1} parent=1 // pred_check_branch
      %15 = sbr.rel (0) target = $region9
    $region8: #{tpu_custom_call.1} parent=1 // pred_region
      _
    $region9: #{tpu_custom_call.1} parent=1 // pred_fallthru
      _
    // Predicated region
    $region10: #{tpu_custom_call.1} parent=1 // pred_check
      _
    $region11: #{tpu_custom_call.1} parent=1 // pred_check_branch
      %17 = sbr.rel (0) target = $region13
    $region12: #{tpu_custom_call.1} parent=1 // pred_region
      _
    $region13: #{tpu_custom_call.1} parent=1 // pred_fallthru
      _
    // Predicated region
    $region14: #{tpu_custom_call.1} parent=1 // pred_check
      _
    $region15: #{tpu_custom_call.1} parent=1 // pred_check_branch
      %19 = sbr.rel (0) target = $region17
    $region16: #{tpu_custom_call.1} parent=1 // pred_region
      _
    $region17: #{tpu_custom_call.1} parent=1 // pred_fallthru
      _
    // Predicated region
    $region18: #{tpu_custom_call.1} parent=1 // pred_check
      _
    $region19: #{tpu_custom_call.1} parent=1 // pred_check_branch
      %21 = sbr.rel (0) target = $region21
    $region20: #{tpu_custom_call.1} parent=1 // pred_region
      %23 = vsyncadd [#allocation3], 0
      %s25 = sshll.u32 %s4, 4
      %s26 = int_to_ptr.hbm [resolvable:$true] %s25
      %s27 = sshll.u32 [#allocation2], 4
      %s28 = int_to_ptr.vmem [resolvable:$true] %s27
      %30 = dma.hbm_to_vmem [thread:$0]  %s26, 64, %s28, [#allocation3]
    $region21: #{tpu_custom_call.1} parent=1 // pred_fallthru
      _
    // Predicated region
    $region22: #{tpu_custom_call.1} parent=1 // pred_check
      _
    $region23: #{tpu_custom_call.1} parent=1 // pred_check_branch
      %32 = sbr.rel (0) target = $region25
    $region24: #{tpu_custom_call.1} parent=1 // pred_region
      %34 = dma.done [#allocation3], 64
    $region25: #{tpu_custom_call.1} parent=1 // pred_fallthru
      _
    %v36 = vld [vmem:[%s0] sm:$0xf]
    %v37 = vld [vmem:[%s0 + $0x4] sm:$0xf]
    %v38 = vld [vmem:[%s0 + $0x8] sm:$0xf]
    %v39 = vld [vmem:[%s0 + $0xc] sm:$0xf]
    %v40 = vld [vmem:[%s0 + $0x10] sm:$0xf]
    %v41 = vld [vmem:[%s0 + $0x14] sm:$0xf]
    %v42 = vld [vmem:[%s0 + $0x18] sm:$0xf]
    %v43 = vld [vmem:[%s0 + $0x1c] sm:$0xf]
    %v44 = vld [vmem:[%s1] sm:$0xf]
    %v45 = vld [vmem:[%s1 + $0x4] sm:$0xf]
    %v46 = vld [vmem:[%s2] sm:$0x1]
    %v48 = vperm.slane %v46, 0
    %v58 = vunpack.c.l.b16 %v36
    %v59 = vunpack.c.l.b16 %v37
    %v60 = vunpack.c.l.b16 %v38
    %v61 = vunpack.c.l.b16 %v39
    %v62 = vunpack.c.l.b16 %v40
    %v63 = vunpack.c.l.b16 %v41
    %v64 = vunpack.c.l.b16 %v42
    %v65 = vunpack.c.l.b16 %v43
    %v66 = vpack.c.b16 %v59, %v58
    %v67 = vpack.c.b16 %v61, %v60
    %v68 = vpack.c.b16 %v63, %v62
    %v69 = vpack.c.b16 %v65, %v64
    %v72 = vunpack.c.l.b16 %v44
    %v73 = vunpack.c.l.b16 %v45
    %v74 = vpack.c.b16 %v73, %v72
    %vm76 = vcmask 130048
    %v78 = vsel %vm76, %v66, 0
    %v81 = vsel %vm76, %v67, 0
    %v84 = vsel %vm76, %v68, 0
    %v87 = vsel %vm76, %v69, 0
    %89 = vmatpush.bf16.msra.mxu0 0
    %90 = vmatpush.bf16.msra.mxu0 0
    %91 = vmatpush.bf16.msra.mxu0 0
    %92 = vmatpush.bf16.msra.mxu0 0
    %93 = vmatpush.bf16.msra.mxu0 0
    %94 = vmatpush.bf16.msra.mxu0 0
    %95 = vmatpush.bf16.msra.mxu0 0
    %96 = vmatpush.bf16.msra.mxu0 %v74
    %97 = vmatmul.bf16.gmra.mxu0 %v78
    %v98 = vpop.f32.mrf.mxu0
    %v99 = vadd.f32 %v48, %v98
    %v100 = vpop.f32.mrf.mxu0
    %v101 = vadd.f32 %v48, %v100
    %102 = vmatmul.bf16.gmra.mxu0 %v81
    %v103 = vpop.f32.mrf.mxu0
    %v104 = vadd.f32 %v48, %v103
    %v105 = vpop.f32.mrf.mxu0
    %v106 = vadd.f32 %v48, %v105
    %107 = vmatmul.bf16.gmra.mxu0 %v84
    %v108 = vpop.f32.mrf.mxu0
    %v109 = vadd.f32 %v48, %v108
    %v110 = vpop.f32.mrf.mxu0
    %v111 = vadd.f32 %v48, %v110
    %112 = vmatmul.bf16.gmra.mxu0 %v87
    %v113 = vpop.f32.mrf.mxu0
    %v114 = vadd.f32 %v48, %v113
    %v115 = vpop.f32.mrf.mxu0
    %v116 = vadd.f32 %v48, %v115
    %117 = vdwg.mxu0
    %v118 = vmax.f32 %v99, 0.0
    %v119 = vmax.f32 %v101, 0.0
    %v120 = vmax.f32 %v104, 0.0
    %v121 = vmax.f32 %v106, 0.0
    %v122 = vmax.f32 %v109, 0.0
    %v123 = vmax.f32 %v111, 0.0
    %v124 = vmax.f32 %v114, 0.0
    %v125 = vmax.f32 %v116, 0.0
    %v126 = vpack.c.bf16 %v119, %v118
    %v127 = vpack.c.bf16 %v121, %v120
    %v128 = vpack.c.bf16 %v123, %v122
    %v129 = vpack.c.bf16 %v125, %v124
    %v130 = vld [vmem:[%s3] sm:$0xff]
    %v131 = vld [vmem:[%s3 + $0x8] sm:$0xff]
    %v132 = vld [vmem:[%s3 + $0x10] sm:$0xff]
    %v133 = vld [vmem:[%s3 + $0x18] sm:$0xff]
    %v134 = vld [vmem:[#allocation2] sm:$0xf]
    %v136 = vperm.slane %v134, 0
    %v137 = vperm.slane %v134, 1
    %v138 = vperm.slane %v134, 2
    %v139 = vperm.slane %v134, 3
    %v148 = vunpack.c.l.b16 %v130
    %v149 = vunpack.c.h.b16 %v130
    %v150 = vunpack.c.l.b16 %v131
    %v151 = vunpack.c.h.b16 %v131
    %v152 = vunpack.c.l.b16 %v132
    %v153 = vunpack.c.h.b16 %v132
    %v154 = vunpack.c.l.b16 %v133
    %v155 = vunpack.c.h.b16 %v133
    %v156 = vpack.c.b16 %v152, %v148
    %v157 = vpack.c.b16 %v153, %v149
    %v158 = vpack.c.b16 %v154, %v150
    %v159 = vpack.c.b16 %v155, %v151
    %v165 = vsel %vm76, %v126, 0
    %v168 = vsel %vm76, %v127, 0
    %v171 = vsel %vm76, %v128, 0
    %v174 = vsel %vm76, %v129, 0
    %176 = vmatpush.bf16.msra.mxu0 0
    %177 = vmatpush.bf16.msra.mxu0 0
    %178 = vmatpush.bf16.msra.mxu0 0
    %179 = vmatpush.bf16.msra.mxu0 0
    %180 = vmatpush.bf16.msra.mxu0 0
    %181 = vmatpush.bf16.msra.mxu0 0
    %182 = vmatpush.bf16.msra.mxu0 0
    %183 = vmatpush.bf16.msra.mxu0 %v156
    %184 = vmatmul.bf16.gmra.mxu0 %v165
    %v185 = vpop.f32.mrf.mxu0
    %v186 = vadd.f32 %v136, %v185
    %v187 = vpop.f32.mrf.mxu0
    %v188 = vadd.f32 %v136, %v187
    %189 = vmatmul.bf16.gmra.mxu0 %v168
    %v190 = vpop.f32.mrf.mxu0
    %v191 = vadd.f32 %v136, %v190
    %v192 = vpop.f32.mrf.mxu0
    %v193 = vadd.f32 %v136, %v192
    %194 = vmatmul.bf16.gmra.mxu0 %v171
    %v195 = vpop.f32.mrf.mxu0
    %v196 = vadd.f32 %v136, %v195
    %v197 = vpop.f32.mrf.mxu0
    %v198 = vadd.f32 %v136, %v197
    %199 = vmatmul.bf16.gmra.mxu0 %v174
    %v200 = vpop.f32.mrf.mxu0
    %v201 = vadd.f32 %v136, %v200
    %v202 = vpop.f32.mrf.mxu0
    %v203 = vadd.f32 %v136, %v202
    %204 = vdwg.mxu0
    %205 = vmatpush.bf16.msra.mxu0 0
    %206 = vmatpush.bf16.msra.mxu0 0
    %207 = vmatpush.bf16.msra.mxu0 0
    %208 = vmatpush.bf16.msra.mxu0 0
    %209 = vmatpush.bf16.msra.mxu0 0
    %210 = vmatpush.bf16.msra.mxu0 0
    %211 = vmatpush.bf16.msra.mxu0 0
    %212 = vmatpush.bf16.msra.mxu0 %v157
    %213 = vmatmul.bf16.gmra.mxu0 %v165
    %v214 = vpop.f32.mrf.mxu0
    %v215 = vadd.f32 %v137, %v214
    %v216 = vpop.f32.mrf.mxu0
    %v217 = vadd.f32 %v137, %v216
    %218 = vmatmul.bf16.gmra.mxu0 %v168
    %v219 = vpop.f32.mrf.mxu0
    %v220 = vadd.f32 %v137, %v219
    %v221 = vpop.f32.mrf.mxu0
    %v222 = vadd.f32 %v137, %v221
    %223 = vmatmul.bf16.gmra.mxu0 %v171
    %v224 = vpop.f32.mrf.mxu0
    %v225 = vadd.f32 %v137, %v224
    %v226 = vpop.f32.mrf.mxu0
    %v227 = vadd.f32 %v137, %v226
    %228 = vmatmul.bf16.gmra.mxu0 %v174
    %v229 = vpop.f32.mrf.mxu0
    %v230 = vadd.f32 %v137, %v229
    %v231 = vpop.f32.mrf.mxu0
    %v232 = vadd.f32 %v137, %v231
    %233 = vdwg.mxu0
    %234 = vmatpush.bf16.msra.mxu0 0
    %235 = vmatpush.bf16.msra.mxu0 0
    %236 = vmatpush.bf16.msra.mxu0 0
    %237 = vmatpush.bf16.msra.mxu0 0
    %238 = vmatpush.bf16.msra.mxu0 0
    %239 = vmatpush.bf16.msra.mxu0 0
    %240 = vmatpush.bf16.msra.mxu0 0
    %241 = vmatpush.bf16.msra.mxu0 %v158
    %242 = vmatmul.bf16.gmra.mxu0 %v165
    %v243 = vpop.f32.mrf.mxu0
    %v244 = vadd.f32 %v138, %v243
    %v245 = vpop.f32.mrf.mxu0
    %v246 = vadd.f32 %v138, %v245
    %247 = vmatmul.bf16.gmra.mxu0 %v168
    %v248 = vpop.f32.mrf.mxu0
    %v249 = vadd.f32 %v138, %v248
    %v250 = vpop.f32.mrf.mxu0
    %v251 = vadd.f32 %v138, %v250
    %252 = vmatmul.bf16.gmra.mxu0 %v171
    %v253 = vpop.f32.mrf.mxu0
    %v254 = vadd.f32 %v138, %v253
    %v255 = vpop.f32.mrf.mxu0
    %v256 = vadd.f32 %v138, %v255
    %257 = vmatmul.bf16.gmra.mxu0 %v174
    %v258 = vpop.f32.mrf.mxu0
    %v259 = vadd.f32 %v138, %v258
    %v260 = vpop.f32.mrf.mxu0
    %v261 = vadd.f32 %v138, %v260
    %262 = vdwg.mxu0
    %263 = vmatpush.bf16.msra.mxu0 0
    %264 = vmatpush.bf16.msra.mxu0 0
    %265 = vmatpush.bf16.msra.mxu0 0
    %266 = vmatpush.bf16.msra.mxu0 0
    %267 = vmatpush.bf16.msra.mxu0 0
    %268 = vmatpush.bf16.msra.mxu0 0
    %269 = vmatpush.bf16.msra.mxu0 0
    %270 = vmatpush.bf16.msra.mxu0 %v159
    %271 = vmatmul.bf16.gmra.mxu0 %v165
    %v272 = vpop.f32.mrf.mxu0
    %v273 = vadd.f32 %v139, %v272
    %v274 = vpop.f32.mrf.mxu0
    %v275 = vadd.f32 %v139, %v274
    %276 = vmatmul.bf16.gmra.mxu0 %v168
    %v277 = vpop.f32.mrf.mxu0
    %v278 = vadd.f32 %v139, %v277
    %v279 = vpop.f32.mrf.mxu0
    %v280 = vadd.f32 %v139, %v279
    %281 = vmatmul.bf16.gmra.mxu0 %v171
    %v282 = vpop.f32.mrf.mxu0
    %v283 = vadd.f32 %v139, %v282
    %v284 = vpop.f32.mrf.mxu0
    %v285 = vadd.f32 %v139, %v284
    %286 = vmatmul.bf16.gmra.mxu0 %v174
    %v287 = vpop.f32.mrf.mxu0
    %v288 = vadd.f32 %v139, %v287
    %v289 = vpop.f32.mrf.mxu0
    %v290 = vadd.f32 %v139, %v289
    %291 = vdwg.mxu0
    %v292 = vpack.c.bf16 %v215, %v186
    %v293 = vpack.c.bf16 %v273, %v244
    %v294 = vpack.c.bf16 %v217, %v188
    %v295 = vpack.c.bf16 %v275, %v246
    %v296 = vpack.c.bf16 %v220, %v191
    %v297 = vpack.c.bf16 %v278, %v249
    %v298 = vpack.c.bf16 %v222, %v193
    %v299 = vpack.c.bf16 %v280, %v251
    %v300 = vpack.c.bf16 %v225, %v196
    %v301 = vpack.c.bf16 %v283, %v254
    %v302 = vpack.c.bf16 %v227, %v198
    %v303 = vpack.c.bf16 %v285, %v256
    %v304 = vpack.c.bf16 %v230, %v201
    %v305 = vpack.c.bf16 %v288, %v259
    %v306 = vpack.c.bf16 %v232, %v203
    %v307 = vpack.c.bf16 %v290, %v261
    %308 = vst [vmem:[#allocation5] sm:$0xff] %v292
    %309 = vst [vmem:[#allocation5 + $0x8] sm:$0xff] %v293
    %310 = vst [vmem:[#allocation5 + $0x10] sm:$0xff] %v294
    %311 = vst [vmem:[#allocation5 + $0x18] sm:$0xff] %v295
    %312 = vst [vmem:[#allocation5 + $0x20] sm:$0xff] %v296
    %313 = vst [vmem:[#allocation5 + $0x28] sm:$0xff] %v297
    %314 = vst [vmem:[#allocation5 + $0x30] sm:$0xff] %v298
    %315 = vst [vmem:[#allocation5 + $0x38] sm:$0xff] %v299
    %316 = vst [vmem:[#allocation5 + $0x40] sm:$0xff] %v300
    %317 = vst [vmem:[#allocation5 + $0x48] sm:$0xff] %v301
    %318 = vst [vmem:[#allocation5 + $0x50] sm:$0xff] %v302
    %319 = vst [vmem:[#allocation5 + $0x58] sm:$0xff] %v303
    %320 = vst [vmem:[#allocation5 + $0x60] sm:$0xff] %v304
    %321 = vst [vmem:[#allocation5 + $0x68] sm:$0xff] %v305
    %322 = vst [vmem:[#allocation5 + $0x70] sm:$0xff] %v306
    %323 = vst [vmem:[#allocation5 + $0x78] sm:$0xff] %v307
    // Predicated region
    $region26: #{tpu_custom_call.1} parent=1 // pred_check
      _
    $region27: #{tpu_custom_call.1} parent=1 // pred_check_branch
      %325 = sbr.rel (0) target = $region29
    $region28: #{tpu_custom_call.1} parent=1 // pred_region
      %327 = vsyncadd [#allocation4], 0
      %s328 = sshll.u32 [#allocation5], 4
      %s329 = int_to_ptr.vmem [resolvable:$true] %s328
      %s330 = sshll.u32 %s5, 4
      %s331 = int_to_ptr.hbm [resolvable:$true] %s330
      %336 = dma.vmem_to_hbm [thread:$0]  %s329, 2048, %s331, [#allocation4], 256, 256, 16
    $region29: #{tpu_custom_call.1} parent=1 // pred_fallthru
      _
    // Predicated region
    $region30: #{tpu_custom_call.1} parent=1 // pred_check
      _
    $region31: #{tpu_custom_call.1} parent=1 // pred_check_branch
      %338 = sbr.rel (0) target = $region33
    $region32: #{tpu_custom_call.1} parent=1 // pred_region
      %340 = dma.done [#allocation4], 2048
    $region33: #{tpu_custom_call.1} parent=1 // pred_fallthru
      _
    %341 = vsyncpa [#allocation3], 1
    %342 = vsyncpa [#allocation4], 1

</llo_original>
